<compile_context>
chip_gen: v5e
topology: v5e:2x2
jax: 0.10.0
libtpu: 0.0.40
codegen_flags: <defaults>
</compile_context>

<pallas_src>
import functools

import jax
import jax.numpy as jnp
from jax.experimental import pallas as pl
from jax.experimental.pallas import tpu as pltpu


_LANE = 128
_TK_MAX = 2048                 # cap on the HW chunk streamed per grid step
_TILE_BUDGET = 8 << 20         # ~8 MiB for the double-buffered fm stream


def _pick_tk(c, hw, itemsize):
    """Largest lane-aligned HW chunk whose double-buffered (C, tk) fits budget."""
    if hw <= _TK_MAX and 2 * c * hw * itemsize <= _TILE_BUDGET:
        return hw                              # single K step (full-extent dim)
    tk = _TILE_BUDGET // (2 * c * itemsize)
    tk = max(_LANE, min(_TK_MAX, (tk // _LANE) * _LANE))
    return hw if tk >= hw else tk


def _vmem_limit_bytes(c, tk, itemsize):
    need = 2 * c * tk * itemsize               # double-buffered fm stream
    need += 2 * c * c * 4                      # accumulator scratch + gram/target
    return int(min(max(32 << 20, 2 * need), 48 << 20))


# ---------------------------------------------------------------------------
# Kernels
# ---------------------------------------------------------------------------
def _accumulate_gram(fm_ref, acc_ref, *, rem):
    """acc += fm_chunk @ fm_chunk^T for the current (1, C, tk) chunk."""
    k = pl.program_id(1)

    @pl.when(k == 0)
    def _():
        acc_ref[...] = jnp.zeros_like(acc_ref)

    fm = fm_ref[0]                                           # (C, tk)
    if rem:  # static: hw % tk != 0 -> mask the tail columns of the last chunk
        last = pl.num_programs(1) - 1
        col = jax.lax.broadcasted_iota(jnp.int32, fm.shape, 1)
        limit = jnp.where(k == last, rem, fm.shape[1])
        fm = jnp.where(col < limit, fm, jnp.zeros_like(fm))

    # Contract the last dims directly: no materialized fm.T, f32 accumulation.
    acc_ref[...] += jax.lax.dot_general(
        fm, fm,
        dimension_numbers=(((1,), (1,)), ((), ())),
        preferred_element_type=jnp.float32)


def _gram_kernel(fm_ref, g_ref, acc_ref, *, inv_norm, rem):
    _accumulate_gram(fm_ref, acc_ref, rem=rem)

    @pl.when(pl.program_id(1) == pl.num_programs(1) - 1)
    def _():
        g_ref[0] = (acc_ref[...] * inv_norm).astype(g_ref.dtype)


def _style_loss_kernel(fm_ref, tgt_ref, out_ref, acc_ref, *, inv_norm, rem):
    _accumulate_gram(fm_ref, acc_ref, rem=rem)

    @pl.when(pl.program_id(1) == pl.num_programs(1) - 1)
    def _():
        d = acc_ref[...] * inv_norm - tgt_ref[...].astype(jnp.float32)
        # Per-batch partial loss, broadcast over a lane-dense (1, 8, 128) block.
        out_ref[...] = jnp.zeros_like(out_ref) + jnp.sum(d * d)


# ---------------------------------------------------------------------------
# Wrappers
# ---------------------------------------------------------------------------
def gram(feature_map):
    """Gram matrices of an (N, C, H, W) feature map -> (N, C, C)."""
    b, c, h, w = feature_map.shape
    hw = h * w
    fm = feature_map.reshape(b, c, hw)         # keep native dtype (f32 or bf16)
    itemsize = jnp.dtype(fm.dtype).itemsize
    tk = _pick_tk(c, hw, itemsize)
    kt = pl.cdiv(hw, tk)
    rem = hw % tk
    inv_norm = 1.0 / float(c * h * w)

    return pl.pallas_call(
        functools.partial(_gram_kernel, inv_norm=inv_norm, rem=rem),
        out_shape=jax.ShapeDtypeStruct((b, c, c), fm.dtype),
        grid_spec=pltpu.PrefetchScalarGridSpec(
            num_scalar_prefetch=0,
            grid=(b, kt),
            in_specs=[pl.BlockSpec((1, c, tk), lambda i, k: (i, 0, k))],
            out_specs=pl.BlockSpec((1, c, c), lambda i, k: (i, 0, 0)),
            scratch_shapes=[pltpu.VMEM((c, c), jnp.float32)],
        ),
        compiler_params=pltpu.CompilerParams(
            dimension_semantics=("parallel", "arbitrary"),
            vmem_limit_bytes=_vmem_limit_bytes(c, tk, itemsize)),
        cost_estimate=pl.CostEstimate(
            flops=2 * b * c * c * hw,
            bytes_accessed=b * c * hw * itemsize + b * c * c * itemsize,
            transcendentals=0),
    )(fm)


class StyleLoss:
    """JAX/Pallas port of the PyTorch StyleLoss module (forward only)."""

    def __init__(self, target_feature_map):
        tgt_gram = gram(target_feature_map)                  # (1, C, C)
        assert tgt_gram.shape[0] == 1, (
            "target feature map must have batch 1 (PyTorch .repeat(b,1,1) "
            "only matches shapes for MSE when the target batch is 1)")
        self.target = tgt_gram[0].astype(jnp.float32)        # (C, C)

    def __call__(self, x):
        b, c, h, w = x.shape
        hw = h * w
        fm = x.reshape(b, c, hw)                              # native dtype stream
        itemsize = jnp.dtype(fm.dtype).itemsize
        tk = _pick_tk(c, hw, itemsize)
        kt = pl.cdiv(hw, tk)
        rem = hw % tk
        inv_norm = 1.0 / float(c * h * w)

        partials = pl.pallas_call(
            functools.partial(_style_loss_kernel, inv_norm=inv_norm, rem=rem),
            out_shape=jax.ShapeDtypeStruct((b, 8, _LANE), jnp.float32),
            grid_spec=pltpu.PrefetchScalarGridSpec(
                num_scalar_prefetch=0,
                grid=(b, kt),
                in_specs=[
                    pl.BlockSpec((1, c, tk), lambda i, k: (i, 0, k)),
                    pl.BlockSpec((c, c), lambda i, k: (0, 0)),
                ],
                out_specs=pl.BlockSpec((1, 8, _LANE), lambda i, k: (i, 0, 0)),
                scratch_shapes=[pltpu.VMEM((c, c), jnp.float32)],
            ),
            compiler_params=pltpu.CompilerParams(
                dimension_semantics=("parallel", "arbitrary"),
                vmem_limit_bytes=_vmem_limit_bytes(c, tk, itemsize)),
            cost_estimate=pl.CostEstimate(
                flops=2 * b * c * c * hw + 3 * b * c * c,
                bytes_accessed=(b * c * hw * itemsize + c * c * 4
                                + b * 8 * _LANE * 4),
                transcendentals=0),
        )(fm, self.target)
        # Per-batch partial sums -> scalar (batch axis stays "parallel").
        return jnp.sum(partials[:, 0, 0])

    # TODO(synk): PyTorch's .backward() hook has no Pallas equivalent here;
    # use jax.grad on the wrapper if gradients are needed.


# ---------------------------------------------------------------------------
# Pure-JAX reference (silent correctness check)
# ---------------------------------------------------------------------------
def _gram_ref(x):
    b, c, h, w = x.shape
    fm = x.reshape(b, c, h * w).astype(jnp.float32)
    return jnp.einsum("bij,bkj->bik", fm, fm) / (c * h * w)


def _style_loss_ref(x, target_fm):
    tgt = _gram_ref(target_fm)[0]
    g = _gram_ref(x)
    return jnp.sum((g - tgt[None]) ** 2)


# ---------------------------------------------------------------------------
if __name__ == "__main__":
    key = jax.random.PRNGKey(0)
    k_tgt, k_x = jax.random.split(key)

    # Small NCHW feature maps consistent with the module.
    target_fm = jax.random.normal(k_tgt, (1, 4, 16, 16), dtype=jnp.float32)
    x = jax.random.normal(k_x, (2, 4, 16, 16), dtype=jnp.float32)

    style_loss = StyleLoss(target_fm)
    loss = style_loss(x)
    loss = jax.block_until_ready(loss)

    # Also sanity-check the standalone gram kernel.
    g = jax.block_until_ready(gram(x))
    assert jnp.allclose(g, _gram_ref(x), rtol=1e-5, atol=1e-5)

    ref = _style_loss_ref(x, target_fm)
    assert jnp.allclose(loss, ref, rtol=1e-4, atol=1e-5), (loss, ref)

    print("KERNEL_OK")
</pallas_src>

<mosaic_0001>
module attributes {stable_mosaic.version = 11 : i64} {
  func.func @_gram_kernel(%arg0: i32, %arg1: i32, %arg2: memref<1x4x256xf32, #tpu.memory_space<vmem>>, %arg3: memref<1x4x4xf32, #tpu.memory_space<vmem>>, %arg4: memref<4x4xf32, #tpu.memory_space<vmem>>) attributes {dimension_semantics = [#tpu.dimension_semantics<parallel>, #tpu.dimension_semantics<arbitrary>], iteration_bounds = array<i64: 1, 1>, scalar_prefetch = 0 : i64, scratch_operands = 1 : i64, tpu.core_type = #tpu.core_type<tc>, window_params = [{transform_indices = @transform_0, window_bounds = array<i64: 1, 4, 256>}, {transform_indices = @transform_1, window_bounds = array<i64: 1, 4, 4>}]} {
    %c0_i32 = arith.constant 0 : i32
    %0 = arith.cmpi eq, %arg1, %c0_i32 : i32
    %1 = arith.extui %0 : i1 to i32
    %c0_i32_0 = arith.constant 0 : i32
    %2 = arith.cmpi ne, %1, %c0_i32_0 : i32
    scf.if %2 {
      %cst_9 = arith.constant 0.000000e+00 : f32
      %12 = vector.broadcast %cst_9 : f32 to vector<4x4xf32>
      %c0_10 = arith.constant 0 : index
      %c0_11 = arith.constant 0 : index
      %13 = vector.load %arg4[%c0_10, %c0_11] : memref<4x4xf32, #tpu.memory_space<vmem>>, vector<4x4xf32>
      tpu.vector_store %arg4[%c0_10, %c0_11], %12 {strides = array<i32>} : memref<4x4xf32, #tpu.memory_space<vmem>>, vector<4x4xf32>,
    } else {
    }
    %c0 = arith.constant 0 : index
    %c0_1 = arith.constant 0 : index
    %c0_2 = arith.constant 0 : index
    %3 = vector.load %arg2[%c0, %c0_1, %c0_2] : memref<1x4x256xf32, #tpu.memory_space<vmem>>, vector<1x4x256xf32>
    %4 = vector.shape_cast %3 : vector<1x4x256xf32> to vector<4x256xf32>
    %c0_3 = arith.constant 0 : index
    %c0_4 = arith.constant 0 : index
    %5 = vector.load %arg4[%c0_3, %c0_4] : memref<4x4xf32, #tpu.memory_space<vmem>>, vector<4x4xf32>
    %cst = arith.constant dense<0.000000e+00> : vector<4x4xf32>
    %6 = tpu.matmul %4, %4, %cst {dimension_numbers = #tpu.dot_dimension_numbers<[1], [1], [0], [0], [0, 0, 1, 0], [], []>} : vector<4x256xf32>, vector<4x256xf32>, vector<4x4xf32> -> vector<4x4xf32>
    %7 = arith.addf %5, %6 : vector<4x4xf32>
    %c0_5 = arith.constant 0 : index
    %c0_6 = arith.constant 0 : index
    %8 = vector.load %arg4[%c0_5, %c0_6] : memref<4x4xf32, #tpu.memory_space<vmem>>, vector<4x4xf32>
    tpu.vector_store %arg4[%c0_5, %c0_6], %7 {strides = array<i32>} : memref<4x4xf32, #tpu.memory_space<vmem>>, vector<4x4xf32>,
    %c0_i32_7 = arith.constant 0 : i32
    %9 = arith.cmpi eq, %arg1, %c0_i32_7 : i32
    %10 = arith.extui %9 : i1 to i32
    %c0_i32_8 = arith.constant 0 : i32
    %11 = arith.cmpi ne, %10, %c0_i32_8 : i32
    scf.if %11 {
      %c0_9 = arith.constant 0 : index
      %c0_10 = arith.constant 0 : index
      %12 = vector.load %arg4[%c0_9, %c0_10] : memref<4x4xf32, #tpu.memory_space<vmem>>, vector<4x4xf32>
      %cst_11 = arith.constant 9.765625E-4 : f32
      %13 = vector.broadcast %cst_11 : f32 to vector<4x4xf32>
      %14 = arith.mulf %12, %13 : vector<4x4xf32>
      %c0_12 = arith.constant 0 : index
      %c0_13 = arith.constant 0 : index
      %c0_14 = arith.constant 0 : index
      %15 = vector.load %arg3[%c0_12, %c0_13, %c0_14] : memref<1x4x4xf32, #tpu.memory_space<vmem>>, vector<1x4x4xf32>
      %16 = vector.shape_cast %15 : vector<1x4x4xf32> to vector<4x4xf32>
      %17 = vector.shape_cast %14 : vector<4x4xf32> to vector<1x4x4xf32>
      tpu.vector_store %arg3[%c0_12, %c0_13, %c0_14], %17 {strides = array<i32>} : memref<1x4x4xf32, #tpu.memory_space<vmem>>, vector<1x4x4xf32>,
    } else {
    }
    return
  }
  func.func @transform_0(%arg0: i32, %arg1: i32) -> (i32, i32, i32) {
    %c0_i32 = arith.constant 0 : i32
    %c0_i32_0 = arith.constant 0 : i32
    return %arg0, %c0_i32, %arg1 : i32, i32, i32
  }
  func.func @transform_1(%arg0: i32, %arg1: i32) -> (i32, i32, i32) {
    %c0_i32 = arith.constant 0 : i32
    %c0_i32_0 = arith.constant 0 : i32
    %c0_i32_1 = arith.constant 0 : i32
    return %arg0, %c0_i32, %c0_i32_0 : i32, i32, i32
  }
}

</mosaic_0001>

<llo_original>
// kernel: tpu_custom_call.1
$region0: #{tpu_custom_call.1}
  #allocation0 [shape = 'u32[]', space=smem, size = 0x4, offset = 0x4, fixed_abs, tag = 'smem constant byte address 0x4 - core index']
  #allocation1 [shape = 'u32[72,128]{1,0:T(1,128)}', space=vmem, size = 0x9000, scoped, tag = 'internal scratch']
  #allocation2 [shape = 'f32[4,4]{1,0:T(4,128)}', space=vmem, size = 0x800, scoped, tag = 'scratch operand']
  %s0 = inlined_call_operand.hbm [shape: f32[1,4,256], index: 0, kind: input, shape index: {}]
  %s1 = inlined_call_operand.hbm [shape: f32[1,4,4], index: 1, kind: output, shape index: {}]
  %s2 = sld [smem:[#allocation0]]
  $region26: #{tpu_custom_call.1} parent=0
    _
  %s4 = ssub.s32 1, %s2
  %s5 = scalar_select 0, %s4, %s2
  $region1: #{tpu_custom_call.1} parent=0
    #allocation3 [shape = 'u8[4096]{0}', space=vmem, size = 0x1000, scoped, tag = 'input window, operand 0, single buffered']
    #allocation4 [shape = 's32[1]{0}', space=sflag, size = 0x4, scoped, tag = 'scoped memory for tpu_custom_call.1']
    #allocation5 [shape = 's32[1]{0}', space=sflag, size = 0x4, scoped, tag = 'scoped memory for tpu_custom_call.1']
    #allocation6 [shape = 'u8[2048]{0}', space=vmem, size = 0x800, scoped, tag = 'output window, operand 0, single buffered']
    %6 = vsyncpa [#allocation4], 0
    %7 = vsyncpa [#allocation5], 0
    // Predicated region
    $region2: #{tpu_custom_call.1} parent=1 // pred_check
      _
    $region3: #{tpu_custom_call.1} parent=1 // pred_check_branch
      %9 = sbr.rel (0) target = $region5
    $region4: #{tpu_custom_call.1} parent=1 // pred_region
      %11 = vsyncadd [#allocation4], 0
      %s13 = sshll.u32 %s0, 4
      %s14 = int_to_ptr.hbm [resolvable:$true] %s13
      %s15 = sshll.u32 [#allocation3], 4
      %s16 = int_to_ptr.vmem [resolvable:$true] %s15
      %18 = dma.hbm_to_vmem [thread:$0]  %s14, 128, %s16, [#allocation4]
    $region5: #{tpu_custom_call.1} parent=1 // pred_fallthru
      _
    // Predicated region
    $region6: #{tpu_custom_call.1} parent=1 // pred_check
      _
    $region7: #{tpu_custom_call.1} parent=1 // pred_check_branch
      %20 = sbr.rel (0) target = $region9
    $region8: #{tpu_custom_call.1} parent=1 // pred_region
      %22 = dma.done [#allocation4], 128
    $region9: #{tpu_custom_call.1} parent=1 // pred_fallthru
      _
    %p23 = scmp.eq.s32.totalorder 0, 0
    // Predicated region
    $region10: #{tpu_custom_call.1} parent=1 // pred_check
      %p24 = pneg %p23
    $region11: #{tpu_custom_call.1} parent=1 // pred_check_branch
      %26 = sbr.rel (%p24) target = $region13
    $region12: #{tpu_custom_call.1} parent=1 // pred_region
      %vm27 = vcmask 27648
      %28 = vst.msk [vmem:[#allocation2] sm:$0xf] %vm27, 0.0
    $region13: #{tpu_custom_call.1} parent=1 // pred_fallthru
      _
    %v29 = vld [vmem:[#allocation3] sm:$0xff]
    %v30 = vld [vmem:[#allocation2] sm:$0xf]
    %32 = vst [vmem:[#allocation1] ss:$2 sm:$0xff] %v29
    %v33 = vld.sshfl [vmem:[#allocation1] sm:$0xff pattern:$0x75316420]
    %v34 = vld.sshfl [vmem:[#allocation1 + $0x8] sm:$0xff pattern:$0x75316420]
    %37 = vst [vmem:[#allocation1] ss:$2 sm:$0xff] %v29
    %v38 = vld.sshfl [vmem:[#allocation1] sm:$0xff pattern:$0x75316420]
    %v39 = vld.sshfl [vmem:[#allocation1 + $0x8] sm:$0xff pattern:$0x75316420]
    %42 = vmatpush.xpose.msra.mxu0 0.0
    %43 = vmatpush.xpose.msra.mxu0 0.0
    %44 = vmatpush.xpose.msra.mxu0 0.0
    %45 = vmatpush.xpose.msra.mxu0 0.0
    %46 = vmatpush.xpose.msra.mxu0 0.0
    %47 = vmatpush.xpose.msra.mxu0 0.0
    %48 = vmatpush.xpose.msra.mxu0 0.0
    %49 = vmatpush.xpose.msra.mxu0 0.0
    %50 = vmatpush.xpose.msra.mxu0 0.0
    %51 = vmatpush.xpose.msra.mxu0 0.0
    %52 = vmatpush.xpose.msra.mxu0 0.0
    %53 = vmatpush.xpose.msra.mxu0 0.0
    %54 = vmatpush.xpose.msra.mxu0 0.0
    %55 = vmatpush.xpose.msra.mxu0 0.0
    %56 = vmatpush.xpose.msra.mxu0 0.0
    %57 = vmatpush.xpose.msra.mxu0 %v38
    %58 = vmatmul.f32.gmra.mxu0 %v33
    %v59 = vpop.f32.mrf.mxu0
    %v60 = vadd.f32 0.0, %v59
    %61 = vdwg.mxu0
    %62 = vmatpush.xpose.msra.mxu0 0.0
    %63 = vmatpush.xpose.msra.mxu0 0.0
    %64 = vmatpush.xpose.msra.mxu0 0.0
    %65 = vmatpush.xpose.msra.mxu0 0.0
    %66 = vmatpush.xpose.msra.mxu0 0.0
    %67 = vmatpush.xpose.msra.mxu0 0.0
    %68 = vmatpush.xpose.msra.mxu0 0.0
    %69 = vmatpush.xpose.msra.mxu0 0.0
    %70 = vmatpush.xpose.msra.mxu0 0.0
    %71 = vmatpush.xpose.msra.mxu0 0.0
    %72 = vmatpush.xpose.msra.mxu0 0.0
    %73 = vmatpush.xpose.msra.mxu0 0.0
    %74 = vmatpush.xpose.msra.mxu0 0.0
    %75 = vmatpush.xpose.msra.mxu0 0.0
    %76 = vmatpush.xpose.msra.mxu0 0.0
    %77 = vmatpush.xpose.msra.mxu0 %v39
    %78 = vmatmul.f32.gmra.mxu0 %v34
    %v79 = vpop.f32.mrf.mxu0
    %v80 = vadd.f32 %v60, %v79
    %81 = vdwg.mxu0
    %v82 = vadd.f32 %v30, %v80
    %vm83 = vcmask 27648
    %84 = vst.msk [vmem:[#allocation2] sm:$0xf] %vm83, %v82
    // Predicated region
    $region14: #{tpu_custom_call.1} parent=1 // pred_check
      %p85 = pneg %p23
    $region15: #{tpu_custom_call.1} parent=1 // pred_check_branch
      %87 = sbr.rel (%p85) target = $region17
    $region16: #{tpu_custom_call.1} parent=1 // pred_region
      %v88 = vld [vmem:[#allocation2] sm:$0xf]
      %v89 = vmul.f32 %v88, 0.0009765625
      %90 = vst.msk [vmem:[#allocation6] sm:$0xf] %vm83, %v89
    $region17: #{tpu_custom_call.1} parent=1 // pred_fallthru
      _
    // Predicated region
    $region18: #{tpu_custom_call.1} parent=1 // pred_check
      _
    $region19: #{tpu_custom_call.1} parent=1 // pred_check_branch
      %92 = sbr.rel (0) target = $region21
    $region20: #{tpu_custom_call.1} parent=1 // pred_region
      %94 = vsyncadd [#allocation5], 0
      %s96 = sshll.u32 [#allocation6], 4
      %s97 = int_to_ptr.vmem [resolvable:$true] %s96
      %s98 = sshll.u32 %s1, 4
      %s99 = int_to_ptr.hbm [resolvable:$true] %s98
      %101 = dma.vmem_to_hbm [thread:$0]  %s97, 64, %s99, [#allocation5]
    $region21: #{tpu_custom_call.1} parent=1 // pred_fallthru
      _
    // Predicated region
    $region22: #{tpu_custom_call.1} parent=1 // pred_check
      _
    $region23: #{tpu_custom_call.1} parent=1 // pred_check_branch
      %103 = sbr.rel (0) target = $region25
    $region24: #{tpu_custom_call.1} parent=1 // pred_region
      %105 = dma.done [#allocation5], 64
    $region25: #{tpu_custom_call.1} parent=1 // pred_fallthru
      _
    %106 = vsyncpa [#allocation4], 1
    %107 = vsyncpa [#allocation5], 1

</llo_original>
